<compile_context>
chip_gen: v6e
topology: v6e:2x2x1
jax: 0.10.0
libtpu: 0.0.40
codegen_flags: <defaults>
</compile_context>

<pallas_src>
import functools

import jax
import jax.numpy as jnp
from jax.experimental import pallas as pl
from jax.experimental.pallas import tpu as pltpu


def _channel_attention_kernel(x_ref, w1t_ref, w2t_ref, o_ref, pool_ref, *,
                              hw_total, hw_tile, needs_mask):
    # x_ref   : (1, C, hw_tile)  spatial chunk of one batch element
    # w1t_ref : (C, Cr)          fc1 1x1-conv weight, pre-transposed in wrapper
    # w2t_ref : (Cr, C)          fc2 1x1-conv weight, pre-transposed in wrapper
    # o_ref   : (1, 1, C)        sigmoid attention, lane-dense
    # pool_ref: (2, C) f32       row 0 = running sum, row 1 = running max
    k = pl.program_id(1)
    nk = pl.num_programs(1)

    x = x_ref[...]                                       # stays in input dtype
    if needs_mask:
        # Last HW block extends past the array; mask the padded tail lanes.
        idx = jax.lax.broadcasted_iota(jnp.int32, x.shape, 2)
        valid = (k * hw_tile + idx) < hw_total
        psum = jnp.sum(jnp.where(valid, x, 0.0), axis=-1,
                       dtype=jnp.float32)                # (1, C)
        pmax = jnp.max(jnp.where(valid, x, -jnp.inf),
                       axis=-1).astype(jnp.float32)      # (1, C)
    else:
        # Single pass, no full-tile f32 copy: f32 accumulation inside the reduce,
        # max is exact in the input dtype.
        psum = jnp.sum(x, axis=-1, dtype=jnp.float32)    # (1, C)
        pmax = jnp.max(x, axis=-1).astype(jnp.float32)   # (1, C)

    @pl.when(k == 0)
    def _():
        pool_ref[0:1, :] = psum
        pool_ref[1:2, :] = pmax

    @pl.when(k != 0)
    def _():
        pool_ref[0:1, :] = pool_ref[0:1, :] + psum
        pool_ref[1:2, :] = jnp.maximum(pool_ref[1:2, :], pmax)

    @pl.when(k == nk - 1)
    def _():
        # Pooled matrix is already staged as [sum; max]; scale row 0 -> mean.
        row = jax.lax.broadcasted_iota(jnp.int32, (2, 1), 0)
        scale = jnp.where(row == 0, jnp.float32(1.0 / hw_total), jnp.float32(1.0))
        p = pool_ref[...] * scale                        # (2, C) = [avg; max]

        w1t = w1t_ref[...].astype(jnp.float32)           # (C, Cr)
        w2t = w2t_ref[...].astype(jnp.float32)           # (Cr, C)
        h = jnp.maximum(jnp.dot(p, w1t, preferred_element_type=jnp.float32), 0.0)
        y = jnp.dot(h, w2t, preferred_element_type=jnp.float32)     # (2, C)

        att = jax.nn.sigmoid(y[0:1, :] + y[1:2, :])      # (1, C)
        o_ref[...] = att.reshape(o_ref.shape).astype(o_ref.dtype)


def _vmem_config():
    """Per-generation (per-buffer input tile budget, scoped vmem_limit_bytes)."""
    vmem_cap = None
    try:
        info = pltpu.get_tpu_info()
        vmem_cap = int(getattr(info, "vmem_capacity_bytes", 0)) or None
    except Exception:
        vmem_cap = None
    if vmem_cap is None:
        kind = ""
        try:
            kind = jax.devices()[0].device_kind.lower()
        except Exception:
            pass
        if "v7" in kind or "7x" in kind:
            vmem_cap = 64 << 20      # v7x: 64 MiB per TensorCore
        elif "v5" in kind or "v6" in kind:
            vmem_cap = 128 << 20     # v5e/v5p/v6e: 128 MiB
        else:
            vmem_cap = 64 << 20      # conservative default
    # Scoped limit: leave headroom under physical capacity.
    vmem_limit = min(int(vmem_cap * 0.82), vmem_cap - (8 << 20))
    # The x tile is double-buffered; keep 2*tile at ~70% of the limit, leaving
    # room for weights, the (2, C) scratch, the output block and internals.
    per_tile_budget = (vmem_limit * 7 // 10) // 2
    return per_tile_budget, vmem_limit


def _pick_hw_tile(hw, bytes_per_hw_elem, budget_bytes):
    """Return (hw_tile, num_hw_tiles, needs_mask).

    bytes_per_hw_elem = C * itemsize (bytes per HW position in one block)."""
    if hw * bytes_per_hw_elem <= budget_bytes:
        return hw, 1, False
    max_tile = max(128, (budget_bytes // max(1, bytes_per_hw_elem)) // 128 * 128)
    # Prefer an exact multiple-of-128 divisor of HW (no remainder masking).
    tile = min(max_tile, hw)
    tile = (tile // 128) * 128
    while tile >= 128:
        if hw % tile == 0:
            return tile, hw // tile, False
        tile -= 128
    # No suitable divisor: capped tile + cdiv grid + in-kernel masking.
    tile = min(max_tile, hw)
    if tile == hw:
        return hw, 1, False
    return tile, pl.cdiv(hw, tile), True


def channel_attention(x_nchw, w_fc1, w_fc2):
    """x_nchw: (B, C, H, W); w_fc1: (Cr, C, 1, 1); w_fc2: (C, Cr, 1, 1)."""
    B, C, H, W = x_nchw.shape
    Cr = w_fc1.shape[0]
    HW = H * W

    x = x_nchw.reshape(B, C, HW)
    # Pre-transpose the weights in the wrapper so the kernel never does .T:
    # kernel computes p @ w1t and h @ w2t.
    w1t = w_fc1.reshape(Cr, C).T     # (C, Cr)
    w2t = w_fc2.reshape(C, Cr).T     # (Cr, C)

    per_tile_budget, vmem_limit = _vmem_config()
    hw_tile, num_hw_tiles, needs_mask = _pick_hw_tile(
        HW, C * x.dtype.itemsize, per_tile_budget)

    # TODO(synk): for production configs with C >= 128, switch to an NHWC-style
    # (B, HW, C) layout (C on lanes) so the HW reduction is plain VALU adds and
    # the output store is an unmasked lane-dense vst; for small C the current
    # layout has better DMA contiguity.

    kernel = functools.partial(_channel_attention_kernel,
                               hw_total=HW, hw_tile=hw_tile,
                               needs_mask=needs_mask)

    cost = pl.CostEstimate(
        flops=2 * B * C * HW + 8 * B * C * Cr,
        transcendentals=B * C,                       # sigmoid
        bytes_accessed=B * C * HW * x.dtype.itemsize
                       + 2 * C * Cr * w1t.dtype.itemsize
                       + B * C * x.dtype.itemsize,
    )

    out = pl.pallas_call(
        kernel,
        out_shape=jax.ShapeDtypeStruct((B, 1, C), x.dtype),
        grid_spec=pltpu.PrefetchScalarGridSpec(
            num_scalar_prefetch=0,
            # Batch axis is parallel (lets v7x's 2nd TensorCore add HBM BW);
            # HW axis is innermost and carries the pooling accumulators.
            grid=(B, num_hw_tiles),
            in_specs=[
                pl.BlockSpec((1, C, hw_tile), lambda b, k: (b, 0, k)),
                pl.BlockSpec((C, Cr), lambda b, k: (0, 0)),
                pl.BlockSpec((Cr, C), lambda b, k: (0, 0)),
            ],
            out_specs=pl.BlockSpec((1, 1, C), lambda b, k: (b, 0, 0)),
            scratch_shapes=[
                pltpu.VMEM((2, C), jnp.float32),   # [running sum; running max]
            ],
        ),
        compiler_params=pltpu.CompilerParams(
            dimension_semantics=("parallel", "arbitrary"),
            vmem_limit_bytes=vmem_limit),
        cost_estimate=cost,
    )(x, w1t, w2t)

    return out.reshape(B, C, 1, 1)


def channel_attention_ref(x_nchw, w_fc1, w_fc2):
    """Pure-JAX reference mirroring the PyTorch forward."""
    B, C, H, W = x_nchw.shape
    Cr = w_fc1.shape[0]
    w1 = w_fc1.reshape(Cr, C)
    w2 = w_fc2.reshape(C, Cr)
    avg = jnp.mean(x_nchw, axis=(2, 3))            # (B, C)
    mx = jnp.max(x_nchw, axis=(2, 3))              # (B, C)

    def mlp(p):
        return jnp.maximum(p @ w1.T, 0.0) @ w2.T   # (B, C)

    return jax.nn.sigmoid(mlp(avg) + mlp(mx)).reshape(B, C, 1, 1)


if __name__ == "__main__":
    # Module config: in_channels=32, reduction=16 -> hidden channels = 2
    B, C, H, W = 2, 32, 16, 16
    reduction = 16
    Cr = C // reduction

    key = jax.random.PRNGKey(0)
    kx, k1, k2 = jax.random.split(key, 3)

    x = jax.random.normal(kx, (B, C, H, W), dtype=jnp.float32)
    # Conv2d(C, Cr, 1, bias=False): (Cr, C, 1, 1); Conv2d(Cr, C, 1, bias=False): (C, Cr, 1, 1)
    w_fc1 = jax.random.normal(k1, (Cr, C, 1, 1), dtype=jnp.float32) * 0.1
    w_fc2 = jax.random.normal(k2, (C, Cr, 1, 1), dtype=jnp.float32) * 0.1

    out = jax.block_until_ready(channel_attention(x, w_fc1, w_fc2))
    ref = channel_attention_ref(x, w_fc1, w_fc2)

    assert out.shape == (B, C, 1, 1)
    assert jnp.allclose(out, ref, atol=1e-5, rtol=1e-5)

    print("KERNEL_OK")
</pallas_src>

<mosaic_0001>
module attributes {stable_mosaic.version = 11 : i64} {
  func.func @_channel_attention_kernel(%arg0: i32, %arg1: i32, %arg2: memref<1x32x256xf32, #tpu.memory_space<vmem>>, %arg3: memref<32x2xf32, #tpu.memory_space<vmem>>, %arg4: memref<2x32xf32, #tpu.memory_space<vmem>>, %arg5: memref<1x1x32xf32, #tpu.memory_space<vmem>>, %arg6: memref<2x32xf32, #tpu.memory_space<vmem>>) attributes {dimension_semantics = [#tpu.dimension_semantics<parallel>, #tpu.dimension_semantics<arbitrary>], iteration_bounds = array<i64: 2, 1>, scalar_prefetch = 0 : i64, scratch_operands = 1 : i64, tpu.core_type = #tpu.core_type<tc>, window_params = [{transform_indices = @transform_0, window_bounds = array<i64: 1, 32, 256>}, {pipeline_mode = #tpu.pipeline_mode<synchronous>, transform_indices = @transform_1, window_bounds = array<i64: 32, 2>}, {pipeline_mode = #tpu.pipeline_mode<synchronous>, transform_indices = @transform_2, window_bounds = array<i64: 2, 32>}, {transform_indices = @transform_3, window_bounds = array<i64: 1, 1, 32>}]} {
    %c0 = arith.constant 0 : index
    %c0_0 = arith.constant 0 : index
    %c0_1 = arith.constant 0 : index
    %0 = vector.load %arg2[%c0, %c0_0, %c0_1] : memref<1x32x256xf32, #tpu.memory_space<vmem>>, vector<1x32x256xf32>
    %cst = arith.constant dense<0.000000e+00> : vector<1x32xf32>
    %1 = vector.multi_reduction <add>, %0, %cst [2] : vector<1x32x256xf32> to vector<1x32xf32>
    %cst_2 = arith.constant dense<0xFF800000> : vector<1x32xf32>
    %2 = vector.multi_reduction <maximumf>, %0, %cst_2 [2] : vector<1x32x256xf32> to vector<1x32xf32>
    %c0_i32 = arith.constant 0 : i32
    %3 = arith.cmpi eq, %arg1, %c0_i32 : i32
    %4 = arith.extui %3 : i1 to i32
    %c0_i32_3 = arith.constant 0 : i32
    %5 = arith.cmpi ne, %4, %c0_i32_3 : i32
    scf.if %5 {
      %c0_8 = arith.constant 0 : index
      %c0_9 = arith.constant 0 : index
      %12 = vector.load %arg6[%c0_8, %c0_9] : memref<2x32xf32, #tpu.memory_space<vmem>>, vector<1x32xf32>
      tpu.vector_store %arg6[%c0_8, %c0_9], %1 {strides = array<i32>} : memref<2x32xf32, #tpu.memory_space<vmem>>, vector<1x32xf32>,
      %c1 = arith.constant 1 : index
      %c0_10 = arith.constant 0 : index
      %13 = vector.load %arg6[%c1, %c0_10] : memref<2x32xf32, #tpu.memory_space<vmem>>, vector<1x32xf32>
      tpu.vector_store %arg6[%c1, %c0_10], %2 {strides = array<i32>} : memref<2x32xf32, #tpu.memory_space<vmem>>, vector<1x32xf32>,
    } else {
    }
    %c0_i32_4 = arith.constant 0 : i32
    %6 = arith.cmpi ne, %arg1, %c0_i32_4 : i32
    %7 = arith.extui %6 : i1 to i32
    %c0_i32_5 = arith.constant 0 : i32
    %8 = arith.cmpi ne, %7, %c0_i32_5 : i32
    scf.if %8 {
      %c0_8 = arith.constant 0 : index
      %c0_9 = arith.constant 0 : index
      %12 = vector.load %arg6[%c0_8, %c0_9] : memref<2x32xf32, #tpu.memory_space<vmem>>, vector<1x32xf32>
      %13 = arith.addf %12, %1 : vector<1x32xf32>
      %c0_10 = arith.constant 0 : index
      %c0_11 = arith.constant 0 : index
      %14 = vector.load %arg6[%c0_10, %c0_11] : memref<2x32xf32, #tpu.memory_space<vmem>>, vector<1x32xf32>
      tpu.vector_store %arg6[%c0_10, %c0_11], %13 {strides = array<i32>} : memref<2x32xf32, #tpu.memory_space<vmem>>, vector<1x32xf32>,
      %c1 = arith.constant 1 : index
      %c0_12 = arith.constant 0 : index
      %15 = vector.load %arg6[%c1, %c0_12] : memref<2x32xf32, #tpu.memory_space<vmem>>, vector<1x32xf32>
      %16 = arith.maximumf %15, %2 : vector<1x32xf32>
      %c1_13 = arith.constant 1 : index
      %c0_14 = arith.constant 0 : index
      %17 = vector.load %arg6[%c1_13, %c0_14] : memref<2x32xf32, #tpu.memory_space<vmem>>, vector<1x32xf32>
      tpu.vector_store %arg6[%c1_13, %c0_14], %16 {strides = array<i32>} : memref<2x32xf32, #tpu.memory_space<vmem>>, vector<1x32xf32>,
    } else {
    }
    %c0_i32_6 = arith.constant 0 : i32
    %9 = arith.cmpi eq, %arg1, %c0_i32_6 : i32
    %10 = arith.extui %9 : i1 to i32
    %c0_i32_7 = arith.constant 0 : i32
    %11 = arith.cmpi ne, %10, %c0_i32_7 : i32
    scf.if %11 {
      %12 = tpu.iota {dimensions = array<i32: 0>} : vector<2x1xi32>
      %c0_i32_8 = arith.constant 0 : i32
      %13 = vector.broadcast %c0_i32_8 : i32 to vector<2x1xi32>
      %14 = arith.cmpi eq, %12, %13 : vector<2x1xi32>
      %cst_9 = arith.constant 3.906250e-03 : f32
      %cst_10 = arith.constant 1.000000e+00 : f32
      %15 = vector.broadcast %cst_9 : f32 to vector<2x1xf32>
      %16 = vector.broadcast %cst_10 : f32 to vector<2x1xf32>
      %17 = arith.select %14, %15, %16 : vector<2x1xi1>, vector<2x1xf32>
      %c0_11 = arith.constant 0 : index
      %c0_12 = arith.constant 0 : index
      %18 = vector.load %arg6[%c0_11, %c0_12] : memref<2x32xf32, #tpu.memory_space<vmem>>, vector<2x32xf32>
      %19 = vector.broadcast %17 : vector<2x1xf32> to vector<2x32xf32>
      %20 = arith.mulf %18, %19 : vector<2x32xf32>
      %c0_13 = arith.constant 0 : index
      %c0_14 = arith.constant 0 : index
      %21 = vector.load %arg3[%c0_13, %c0_14] : memref<32x2xf32, #tpu.memory_space<vmem>>, vector<32x2xf32>
      %c0_15 = arith.constant 0 : index
      %c0_16 = arith.constant 0 : index
      %22 = vector.load %arg4[%c0_15, %c0_16] : memref<2x32xf32, #tpu.memory_space<vmem>>, vector<2x32xf32>
      %cst_17 = arith.constant dense<0.000000e+00> : vector<2x2xf32>
      %23 = tpu.matmul %20, %21, %cst_17 {dimension_numbers = #tpu.dot_dimension_numbers<[1], [0], [0], [1], [0, 0, 1, 1], [], []>} : vector<2x32xf32>, vector<32x2xf32>, vector<2x2xf32> -> vector<2x2xf32>
      %cst_18 = arith.constant 0.000000e+00 : f32
      %24 = vector.broadcast %cst_18 : f32 to vector<2x2xf32>
      %25 = arith.maximumf %23, %24 : vector<2x2xf32>
      %cst_19 = arith.constant dense<0.000000e+00> : vector<2x32xf32>
      %26 = tpu.matmul %25, %22, %cst_19 {dimension_numbers = #tpu.dot_dimension_numbers<[1], [0], [0], [1], [0, 0, 1, 1], [], []>} : vector<2x2xf32>, vector<2x32xf32>, vector<2x32xf32> -> vector<2x32xf32>
      %27 = vector.extract_strided_slice %26 {offsets = [0, 0], sizes = [1, 32], strides = [1, 1]} : vector<2x32xf32> to vector<1x32xf32>
      %28 = vector.extract_strided_slice %26 {offsets = [1, 0], sizes = [1, 32], strides = [1, 1]} : vector<2x32xf32> to vector<1x32xf32>
      %29 = arith.addf %27, %28 : vector<1x32xf32>
      %30 = arith.negf %29 : vector<1x32xf32>
      %31 = math.exp %30 : vector<1x32xf32>
      %cst_20 = arith.constant 1.000000e+00 : f32
      %32 = vector.broadcast %cst_20 : f32 to vector<1x32xf32>
      %33 = arith.addf %32, %31 : vector<1x32xf32>
      %34 = arith.divf %32, %33 : vector<1x32xf32>
      %35 = vector.shape_cast %34 : vector<1x32xf32> to vector<1x1x32xf32>
      %c0_21 = arith.constant 0 : index
      %c0_22 = arith.constant 0 : index
      %c0_23 = arith.constant 0 : index
      %36 = vector.load %arg5[%c0_21, %c0_22, %c0_23] : memref<1x1x32xf32, #tpu.memory_space<vmem>>, vector<1x1x32xf32>
      tpu.vector_store %arg5[%c0_21, %c0_22, %c0_23], %35 {strides = array<i32>} : memref<1x1x32xf32, #tpu.memory_space<vmem>>, vector<1x1x32xf32>,
    } else {
    }
    return
  }
  func.func @transform_0(%arg0: i32, %arg1: i32) -> (i32, i32, i32) {
    %c0_i32 = arith.constant 0 : i32
    %c0_i32_0 = arith.constant 0 : i32
    return %arg0, %c0_i32, %arg1 : i32, i32, i32
  }
  func.func @transform_1(%arg0: i32, %arg1: i32) -> (i32, i32) {
    %c0_i32 = arith.constant 0 : i32
    %c0_i32_0 = arith.constant 0 : i32
    %c0_i32_1 = arith.constant 0 : i32
    return %c0_i32, %c0_i32_0 : i32, i32
  }
  func.func @transform_2(%arg0: i32, %arg1: i32) -> (i32, i32) {
    %c0_i32 = arith.constant 0 : i32
    %c0_i32_0 = arith.constant 0 : i32
    %c0_i32_1 = arith.constant 0 : i32
    return %c0_i32, %c0_i32_0 : i32, i32
  }
  func.func @transform_3(%arg0: i32, %arg1: i32) -> (i32, i32, i32) {
    %c0_i32 = arith.constant 0 : i32
    %c0_i32_0 = arith.constant 0 : i32
    %c0_i32_1 = arith.constant 0 : i32
    return %arg0, %c0_i32, %c0_i32_0 : i32, i32, i32
  }
}

</mosaic_0001>

<llo_original>
// kernel: tpu_custom_call.1
$region0: #{tpu_custom_call.1}
  #allocation0 [shape = 'u32[]', space=smem, size = 0x4, offset = 0x4, fixed_abs, tag = 'smem constant byte address 0x4 - core index']
  #allocation1 [shape = 'u32[144,128]{1,0:T(1,128)}', space=vmem, size = 0x12000, scoped, tag = 'internal scratch']
  #allocation2 [shape = 'f32[2,32]{1,0:T(2,128)}', space=vmem, size = 0x400, scoped, tag = 'scratch operand']
  %s0 = inlined_call_operand.hbm [shape: f32[2,32,256], index: 0, kind: input, shape index: {}]
  %s1 = inlined_call_operand.vmem [shape: f32[32,2], index: 1, kind: input, shape index: {}]
  %s2 = inlined_call_operand.vmem [shape: f32[2,32], index: 2, kind: input, shape index: {}]
  %s3 = inlined_call_operand.hbm [shape: f32[2,1,32], index: 3, kind: output, shape index: {}]
  %s4 = sld [smem:[#allocation0]]
  $region61: #{tpu_custom_call.1} parent=0
    _
  %s6 = ssub.s32 1, %s4
  %s7 = scalar_select 0, %s6, %s4
  $region1: #{tpu_custom_call.1} parent=0
    #allocation3 [shape = 'u8[65536]{0}', space=vmem, size = 0x10000, scoped, tag = 'input window, operand 0']
    #allocation4 [shape = 's32[2]{0}', space=sflag, size = 0x8, scoped, tag = 'scoped memory for tpu_custom_call.1']
    #allocation5 [shape = 's32[2]{0}', space=sflag, size = 0x8, scoped, tag = 'scoped memory for tpu_custom_call.1']
    #allocation6 [shape = 'u8[1024]{0}', space=vmem, size = 0x400, scoped, tag = 'output window, operand 0']
    %8 = vsyncpa [#allocation4], 0
    %s9 = scalar_lea.sflag [#allocation4], 1
    %10 = vsyncpa %s9, 0
    %11 = vsyncpa [#allocation5], 0
    %s12 = scalar_lea.sflag [#allocation5], 1
    %13 = vsyncpa %s12, 0
    loop: start=0, step=1, limit=4
    $region2: #{tpu_custom_call.1} parent=1 // loop_pre_header
      _
    $region3: #{tpu_custom_call.1} parent=1 // loop_header
      %s15 = sphi 0, %s19
      %p16 = scmp.ge.s32.totalorder %s15, 4
      %s22 = sphi 0, %s34
      %s23 = sphi 0, %s30
      %s24 = sphi 0, %s22
      %s25 = sphi 0, %s23
      %s26 = sphi 0, %s24
      %s27 = sphi 0, %s25
      %s39 = sphi 0, %s41
      %s42 = sphi 0, %s39
      %s43 = sphi 0, %s42
      %s59 = sphi 0, %s43
      %s63 = sphi 0, %s63
      %s65 = sphi 0, %s63
      %s66 = sphi 0, %s65
      %s80 = sphi 0, %s66
      %s84 = sphi 0, %s84
      %s86 = sphi 0, %s84
      %s87 = sphi 0, %s86
      %s101 = sphi 0, %s87
      %s107 = sphi 0, %s109
      %s110 = sphi 0, %s107
      %s111 = sphi 0, %s110
      %s127 = sphi 0, %s111
    $region4: #{tpu_custom_call.1} parent=1 // loop_header_branch
      %18 = sbr.rel (%p16) target = $region8
    $region5: #{tpu_custom_call.1} parent=1 // loop_body
      %s20 = ssub.s32 %s15, 1
      %s21 = ssub.s32 %s15, 2
      %s28 = sadd.s32 1, %s23
      %p29 = scmp.ge.s32.totalorder %s28, 1
      %s30 = scalar_select %p29, 0, %s28
      %s31 = sadd.s32 1, %s22
      %s32 = scalar_select %p29, %s31, %s22
      %p33 = scmp.ge.s32.totalorder %s32, 2
      %s34 = scalar_select %p33, 0, %s32
      %s35 = ssub.s32 %s22, %s34
      %s36 = ssub.s32 %s23, %s30
      %s37 = sor.u32 %s35, %s36
      %p38 = scmp.eq.s32.totalorder %s37, 0
      %s40 = sadd.s32 %s39, 1
      %s41 = scalar_select %p38, %s39, %s40
      %p44 = pneg %p38
      %p45 = scmp.eq.s32.totalorder %s15, 1
      %p46 = por %p44, %p45
      %p47 = scmp.ne.s32.totalorder %s39, %s42
      %p48 = scmp.eq.s32.totalorder %s15, 0
      %p49 = por %p47, %p48
      %p50 = scmp.ne.s32.totalorder %s39, %s42
      %p51 = scmp.eq.s32.totalorder %s20, 1
      %p52 = por %p50, %p51
      %p53 = scmp.ne.s32.totalorder %s42, %s43
      %p54 = scmp.eq.s32.totalorder %s20, 0
      %p55 = por %p53, %p54
      %p56 = scmp.ne.s32.totalorder %s42, %s43
      %p57 = scmp.eq.s32.totalorder %s21, 1
      %p58 = por %p56, %p57
      %p60 = scmp.ne.s32.totalorder %s43, %s59
      %p61 = scmp.eq.s32.totalorder %s21, 0
      %p62 = por %p60, %p61
      %s64 = sadd.s32 %s63, 1
      %p67 = scmp.eq.s32.totalorder %s15, 1
      %p68 = scmp.ne.s32.totalorder %s63, %s65
      %p69 = scmp.eq.s32.totalorder %s15, 0
      %p70 = por %p68, %p69
      %p71 = scmp.ne.s32.totalorder %s63, %s65
      %p72 = scmp.eq.s32.totalorder %s20, 1
      %p73 = por %p71, %p72
      %p74 = scmp.ne.s32.totalorder %s65, %s66
      %p75 = scmp.eq.s32.totalorder %s20, 0
      %p76 = por %p74, %p75
      %p77 = scmp.ne.s32.totalorder %s65, %s66
      %p78 = scmp.eq.s32.totalorder %s21, 1
      %p79 = por %p77, %p78
      %p81 = scmp.ne.s32.totalorder %s66, %s80
      %p82 = scmp.eq.s32.totalorder %s21, 0
      %p83 = por %p81, %p82
      %s85 = sadd.s32 %s84, 1
      %p88 = scmp.eq.s32.totalorder %s15, 1
      %p89 = scmp.ne.s32.totalorder %s84, %s86
      %p90 = scmp.eq.s32.totalorder %s15, 0
      %p91 = por %p89, %p90
      %p92 = scmp.ne.s32.totalorder %s84, %s86
      %p93 = scmp.eq.s32.totalorder %s20, 1
      %p94 = por %p92, %p93
      %p95 = scmp.ne.s32.totalorder %s86, %s87
      %p96 = scmp.eq.s32.totalorder %s20, 0
      %p97 = por %p95, %p96
      %p98 = scmp.ne.s32.totalorder %s86, %s87
      %p99 = scmp.eq.s32.totalorder %s21, 1
      %p100 = por %p98, %p99
      %p102 = scmp.ne.s32.totalorder %s87, %s101
      %p103 = scmp.eq.s32.totalorder %s21, 0
      %p104 = por %p102, %p103
      %s105 = ssub.s32 %s22, %s34
      %p106 = scmp.eq.s32.totalorder %s105, 0
      %s108 = sadd.s32 %s107, 1
      %s109 = scalar_select %p106, %s107, %s108
      %p112 = pneg %p106
      %p113 = scmp.eq.s32.totalorder %s15, 1
      %p114 = por %p112, %p113
      %p115 = scmp.ne.s32.totalorder %s107, %s110
      %p116 = scmp.eq.s32.totalorder %s15, 0
      %p117 = por %p115, %p116
      %p118 = scmp.ne.s32.totalorder %s107, %s110
      %p119 = scmp.eq.s32.totalorder %s20, 1
      %p120 = por %p118, %p119
      %p121 = scmp.ne.s32.totalorder %s110, %s111
      %p122 = scmp.eq.s32.totalorder %s20, 0
      %p123 = por %p121, %p122
      %p124 = scmp.ne.s32.totalorder %s110, %s111
      %p125 = scmp.eq.s32.totalorder %s21, 1
      %p126 = por %p124, %p125
      %p128 = scmp.ne.s32.totalorder %s111, %s127
      %p129 = scmp.eq.s32.totalorder %s21, 0
      %p130 = por %p128, %p129
      %p131 = scmp.le.s32.totalorder 1, %s15
      %p132 = scmp.lt.s32.totalorder %s15, 3
      %p133 = pnand %p131, %p132
      %p134 = pneg %p133
      // Predicated region
      $region9: #{tpu_custom_call.1} parent=5 // pred_check
        _
      $region10: #{tpu_custom_call.1} parent=5 // pred_check_branch
        %136 = sbr.rel (%p133) target = $region12
      $region11: #{tpu_custom_call.1} parent=5 // pred_region
        %s137 = ssub.s32 %s15, 1
        // Predicated region
        $region13: #{tpu_custom_call.1} parent=11 // pred_check
          %p138 = pneg %p76
        $region14: #{tpu_custom_call.1} parent=11 // pred_check_branch
          %140 = sbr.rel (%p138) target = $region16
        $region15: #{tpu_custom_call.1} parent=11 // pred_region
          _
        $region16: #{tpu_custom_call.1} parent=11 // pred_fallthru
          _
        // Predicated region
        $region17: #{tpu_custom_call.1} parent=11 // pred_check
          %p141 = pneg %p97
        $region18: #{tpu_custom_call.1} parent=11 // pred_check_branch
          %143 = sbr.rel (%p141) target = $region20
        $region19: #{tpu_custom_call.1} parent=11 // pred_region
          _
        $region20: #{tpu_custom_call.1} parent=11 // pred_fallthru
          _
      $region12: #{tpu_custom_call.1} parent=5 // pred_fallthru
        _
      %p144 = scmp.lt.s32.totalorder %s15, 2
      // Predicated region
      $region21: #{tpu_custom_call.1} parent=5 // pred_check
        %p145 = pneg %p144
      $region22: #{tpu_custom_call.1} parent=5 // pred_check_branch
        %147 = sbr.rel (%p145) target = $region24
      $region23: #{tpu_custom_call.1} parent=5 // pred_region
        // Predicated region
        $region25: #{tpu_custom_call.1} parent=23 // pred_check
          %p148 = pneg %p49
        $region26: #{tpu_custom_call.1} parent=23 // pred_check_branch
          %150 = sbr.rel (%p148) target = $region28
        $region27: #{tpu_custom_call.1} parent=23 // pred_region
          %s151 = sand.u32 %s39, 1
          %s152 = scalar_lea.sflag [#allocation4], %s151
          %s153 = sand.u32 %s39, 1
          %s154 = smul.addr %s153, 64
          %s155 = scalar_lea.vmem [#allocation3], %s154
          %s156 = smul.u32 2, %s23
          %s158 = ssub.s32 1024, 1024
          %159 = vsyncadd %s152, %s158
          %s160 = smul.addr %s22, 8
          %s161 = sadd.s32 %s156, %s160
          %s162 = smul.addr %s161, 128
          %s163 = scalar_lea.hbm %s0, %s162
          %s164 = sshll.u32 %s155, 4
          %s165 = int_to_ptr.vmem [resolvable:$true] %s164
          %170 = dma.hbm_to_vmem [thread:$0]  %s163, 1024, %s165, %s152, 256, 256, 16
        $region28: #{tpu_custom_call.1} parent=23 // pred_fallthru
          _
      $region24: #{tpu_custom_call.1} parent=5 // pred_fallthru
        _
      %p171 = scmp.le.s32.totalorder 1, %s15
      %p172 = scmp.lt.s32.totalorder %s15, 3
      %p173 = pnand %p171, %p172
      %p174 = pneg %p173
      // Predicated region
      $region29: #{tpu_custom_call.1} parent=5 // pred_check
        _
      $region30: #{tpu_custom_call.1} parent=5 // pred_check_branch
        %176 = sbr.rel (%p173) target = $region32
      $region31: #{tpu_custom_call.1} parent=5 // pred_region
        %s177 = ssub.s32 %s15, 1
        %s178 = sand.u32 %s42, 1
        %s179 = scalar_lea.sflag [#allocation4], %s178
        %s180 = sand.u32 %s42, 1
        %s181 = smul.addr %s180, 64
        %s182 = scalar_lea.vmem [#allocation3], %s181
        // Predicated region
        $region33: #{tpu_custom_call.1} parent=31 // pred_check
          %p183 = pneg %p55
        $region34: #{tpu_custom_call.1} parent=31 // pred_check_branch
          %185 = sbr.rel (%p183) target = $region36
        $region35: #{tpu_custom_call.1} parent=31 // pred_region
          %186 = dma.done %s179, 1024
        $region36: #{tpu_custom_call.1} parent=31 // pred_fallthru
          _
        %s187 = sand.u32 %s42, 1
        %s188 = scalar_lea.sflag [#allocation4], %s187
        %s189 = sand.u32 %s42, 1
        %s190 = smul.addr %s189, 64
        %s191 = scalar_lea.vmem [#allocation3], %s190
        %p192 = pneg %p55
        %p193 = pneg %p52
        %p194 = pneg %p76
        %p195 = pneg %p73
        %p196 = pneg %p97
        %p197 = pneg %p94
        %p198 = pneg %p123
        %p199 = pneg %p120
        %s200 = sand.u32 %s110, 1
        %s201 = scalar_lea.sflag [#allocation5], %s200
        %s202 = sand.u32 %s110, 1
        %s203 = scalar_lea.vmem [#allocation6], %s202
        %s204 = smul.u32 2, %s25
        %v205 = vld [vmem:[%s182] sm:$0xff]
        %v206 = vld [vmem:[%s182 + $0x8] sm:$0xff]
        %v207 = vld [vmem:[%s182 + $0x10] sm:$0xff]
        %v208 = vld [vmem:[%s182 + $0x18] sm:$0xff]
        %v209 = vld [vmem:[%s182 + $0x20] sm:$0xff]
        %v210 = vld [vmem:[%s182 + $0x28] sm:$0xff]
        %v211 = vld [vmem:[%s182 + $0x30] sm:$0xff]
        %v212 = vld [vmem:[%s182 + $0x38] sm:$0xff]
        %v213 = vadd.f32 %v205, %v206
        %214 = vadd.xlane.f32.xlu0 %v213
        %v215 = vpop.xlane.xlu0 %214
        %v216 = vadd.f32 %v207, %v208
        %217 = vadd.xlane.f32.xlu0 %v216
        %v218 = vpop.xlane.xlu0 %217
        %v219 = vadd.f32 %v209, %v210
        %220 = vadd.xlane.f32.xlu0 %v219
        %v221 = vpop.xlane.xlu0 %220
        %v222 = vadd.f32 %v211, %v212
        %223 = vadd.xlane.f32.xlu0 %v222
        %v224 = vpop.xlane.xlu0 %223
        %v225 = vmax.f32 %v205, %v206
        %226 = vmax.xlane.f32.xlu0 %v225
        %v227 = vpop.xlane.xlu0 %226
        %v228 = vmax.f32 %v207, %v208
        %229 = vmax.xlane.f32.xlu0 %v228
        %v230 = vpop.xlane.xlu0 %229
        %v231 = vmax.f32 %v209, %v210
        %232 = vmax.xlane.f32.xlu0 %v231
        %v233 = vpop.xlane.xlu0 %232
        %v234 = vmax.f32 %v211, %v212
        %235 = vmax.xlane.f32.xlu0 %v234
        %v236 = vpop.xlane.xlu0 %235
        %p237 = scmp.eq.s32.totalorder %s25, 0
        // Predicated region
        $region37: #{tpu_custom_call.1} parent=31 // pred_check
          %p238 = pneg %p237
        $region38: #{tpu_custom_call.1} parent=31 // pred_check_branch
          %240 = sbr.rel (%p238) target = $region40
        $region39: #{tpu_custom_call.1} parent=31 // pred_region
          %v245 = vlaneseq
          %v246 = vand.u32 %v245, 127
          %v247 = vlaneseq
          %v248 = vshrl.u32 %v247, 7
          %v249 = vsub.s32 %v246, %v248
          %v250 = vrot.slane %v215, %v249
          %v251 = vadd.s32 %v246, 4294967288
          %v252 = vlaneseq
          %v253 = vshrl.u32 %v252, 7
          %v254 = vsub.s32 %v251, %v253
          %v255 = vrot.slane %v218, %v254
          %vm256 = vcmask 130112
          %v257 = vsel %vm256, %v255, %v250
          %v258 = vadd.s32 %v246, 4294967280
          %v259 = vlaneseq
          %v260 = vshrl.u32 %v259, 7
          %v261 = vsub.s32 %v258, %v260
          %v262 = vrot.slane %v221, %v261
          %vm263 = vcmask 195712
          %v264 = vsel %vm263, %v262, %v257
          %v265 = vadd.s32 %v246, 4294967272
          %v266 = vlaneseq
          %v267 = vshrl.u32 %v266, 7
          %v268 = vsub.s32 %v265, %v267
          %v269 = vrot.slane %v224, %v268
          %vm270 = vcmask 261312
          %v271 = vsel %vm270, %v269, %v264
          %vm273 = vcmask 253952
          %274 = vst.msk [vmem:[#allocation2] sm:$0x1] %vm273, %v271
          %v279 = vlaneseq
          %v280 = vshrl.u32 %v279, 7
          %v281 = vsub.s32 %v246, %v280
          %v282 = vrot.slane %v227, %v281
          %v283 = vlaneseq
          %v284 = vshrl.u32 %v283, 7
          %v285 = vsub.s32 %v251, %v284
          %v286 = vrot.slane %v230, %v285
          %v287 = vsel %vm256, %v286, %v282
          %v288 = vlaneseq
          %v289 = vshrl.u32 %v288, 7
          %v290 = vsub.s32 %v258, %v289
          %v291 = vrot.slane %v233, %v290
          %v292 = vsel %vm263, %v291, %v287
          %v293 = vlaneseq
          %v294 = vshrl.u32 %v293, 7
          %v295 = vsub.s32 %v265, %v294
          %v296 = vrot.slane %v236, %v295
          %v297 = vsel %vm270, %v296, %v292
          %299 = vst.msk [vmem:[#allocation2 + $0x1] sm:$0x1] %vm273, %v297
        $region40: #{tpu_custom_call.1} parent=31 // pred_fallthru
          _
        %p300 = scmp.ne.s32.totalorder %s25, 0
        // Predicated region
        $region41: #{tpu_custom_call.1} parent=31 // pred_check
          %p301 = pneg %p300
        $region42: #{tpu_custom_call.1} parent=31 // pred_check_branch
          %303 = sbr.rel (%p301) target = $region44
        $region43: #{tpu_custom_call.1} parent=31 // pred_region
          %v304 = vld [vmem:[#allocation2] sm:$0x1]
          %v309 = vlaneseq
          %v310 = vand.u32 %v309, 127
          %v311 = vlaneseq
          %v312 = vshrl.u32 %v311, 7
          %v313 = vsub.s32 %v310, %v312
          %v314 = vrot.slane %v215, %v313
          %v315 = vadd.s32 %v310, 4294967288
          %v316 = vlaneseq
          %v317 = vshrl.u32 %v316, 7
          %v318 = vsub.s32 %v315, %v317
          %v319 = vrot.slane %v218, %v318
          %vm320 = vcmask 130112
          %v321 = vsel %vm320, %v319, %v314
          %v322 = vadd.s32 %v310, 4294967280
          %v323 = vlaneseq
          %v324 = vshrl.u32 %v323, 7
          %v325 = vsub.s32 %v322, %v324
          %v326 = vrot.slane %v221, %v325
          %vm327 = vcmask 195712
          %v328 = vsel %vm327, %v326, %v321
          %v329 = vadd.s32 %v310, 4294967272
          %v330 = vlaneseq
          %v331 = vshrl.u32 %v330, 7
          %v332 = vsub.s32 %v329, %v331
          %v333 = vrot.slane %v224, %v332
          %vm334 = vcmask 261312
          %v335 = vsel %vm334, %v333, %v328
          %v337 = vadd.f32 %v304, %v335
          %vm338 = vcmask 253952
          %339 = vst.msk [vmem:[#allocation2] sm:$0x1] %vm338, %v337
          %v340 = vld [vmem:[#allocation2 + $0x1] sm:$0x1]
          %v345 = vlaneseq
          %v346 = vshrl.u32 %v345, 7
          %v347 = vsub.s32 %v310, %v346
          %v348 = vrot.slane %v227, %v347
          %v349 = vlaneseq
          %v350 = vshrl.u32 %v349, 7
          %v351 = vsub.s32 %v315, %v350
          %v352 = vrot.slane %v230, %v351
          %v353 = vsel %vm320, %v352, %v348
          %v354 = vlaneseq
          %v355 = vshrl.u32 %v354, 7
          %v356 = vsub.s32 %v322, %v355
          %v357 = vrot.slane %v233, %v356
          %v358 = vsel %vm327, %v357, %v353
          %v359 = vlaneseq
          %v360 = vshrl.u32 %v359, 7
          %v361 = vsub.s32 %v329, %v360
          %v362 = vrot.slane %v236, %v361
          %v363 = vsel %vm334, %v362, %v358
          %v365 = vmax.f32 %v340, %v363
          %366 = vst.msk [vmem:[#allocation2 + $0x1] sm:$0x1] %vm338, %v365
        $region44: #{tpu_custom_call.1} parent=31 // pred_fallthru
          _
        // Predicated region
        $region45: #{tpu_custom_call.1} parent=31 // pred_check
          %p367 = pneg %p237
        $region46: #{tpu_custom_call.1} parent=31 // pred_check_branch
          %369 = sbr.rel (%p367) target = $region48
        $region47: #{tpu_custom_call.1} parent=31 // pred_region
          %v370 = vlaneseq
          %v371 = vshrl.u32 %v370, 7
          %vm372 = vcmp.eq.s32.totalorder %v371, 0
          %v373 = vsel %vm372, 0.00390625, 1.0
          %v374 = vld [vmem:[#allocation2] sm:$0x3]
          %v375 = vmul.f32 %v374, %v373
          %v376 = vld [vmem:[%s1] sm:$0xff]
          %v377 = vld [vmem:[%s1 + $0x8] sm:$0xff]
          %v378 = vld [vmem:[%s1 + $0x10] sm:$0xff]
          %v379 = vld [vmem:[%s1 + $0x18] sm:$0xff]
          %v380 = vld [vmem:[%s2] sm:$0x3]
          %vm381 = vcmask 261120
          %v383 = vsel %vm381, %v375, 0
          %385 = vmatprep.subr.mxu0 0.0
          %386 = vmatpush1.msra.mxu0 0.0
          %387 = vmatprep.subr.mxu0 0.0
          %388 = vmatpush1.msra.mxu0 0.0
          %389 = vmatprep.subr.mxu0 0.0
          %390 = vmatpush1.msra.mxu0 0.0
          %391 = vmatprep.subr.mxu0 0.0
          %392 = vmatpush1.msra.mxu0 0.0
          %393 = vmatprep.subr.mxu0 0.0
          %394 = vmatpush1.msra.mxu0 0.0
          %395 = vmatprep.subr.mxu0 0.0
          %396 = vmatpush1.msra.mxu0 0.0
          %397 = vmatprep.subr.mxu0 0.0
          %398 = vmatpush1.msra.mxu0 0.0
          %399 = vmatprep.subr.mxu0 0.0
          %400 = vmatpush1.msra.mxu0 0.0
          %401 = vmatprep.subr.mxu0 0.0
          %402 = vmatpush1.msra.mxu0 0.0
          %403 = vmatprep.subr.mxu0 0.0
          %404 = vmatpush1.msra.mxu0 0.0
          %405 = vmatprep.subr.mxu0 0.0
          %406 = vmatpush1.msra.mxu0 0.0
          %407 = vmatprep.subr.mxu0 0.0
          %408 = vmatpush1.msra.mxu0 0.0
          %409 = vmatprep.subr.mxu0 0.0
          %410 = vmatpush1.msra.mxu0 %v379
          %411 = vmatprep.subr.mxu0 0.0
          %412 = vmatpush1.msra.mxu0 %v378
          %413 = vmatprep.subr.mxu0 0.0
          %414 = vmatpush1.msra.mxu0 %v377
          %415 = vmatprep.subr.mxu0 0.0
          %416 = vmatpush1.msra.mxu0 %v376
          %417 = vmatprep.subr.mxu0 0.0
          %418 = vmatpush2.msra.mxu0 0.0
          %419 = vmatprep.subr.mxu0 0.0
          %420 = vmatpush2.msra.mxu0 0.0
          %421 = vmatprep.subr.mxu0 0.0
          %422 = vmatpush2.msra.mxu0 0.0
          %423 = vmatprep.subr.mxu0 0.0
          %424 = vmatpush2.msra.mxu0 0.0
          %425 = vmatprep.subr.mxu0 0.0
          %426 = vmatpush2.msra.mxu0 0.0
          %427 = vmatprep.subr.mxu0 0.0
          %428 = vmatpush2.msra.mxu0 0.0
          %429 = vmatprep.subr.mxu0 0.0
          %430 = vmatpush2.msra.mxu0 0.0
          %431 = vmatprep.subr.mxu0 0.0
          %432 = vmatpush2.msra.mxu0 0.0
          %433 = vmatprep.subr.mxu0 0.0
          %434 = vmatpush2.msra.mxu0 0.0
          %435 = vmatprep.subr.mxu0 0.0
          %436 = vmatpush2.msra.mxu0 0.0
          %437 = vmatprep.subr.mxu0 0.0
          %438 = vmatpush2.msra.mxu0 0.0
          %439 = vmatprep.subr.mxu0 0.0
          %440 = vmatpush2.msra.mxu0 0.0
          %441 = vmatprep.subr.mxu0 0.0
          %442 = vmatpush2.msra.mxu0 0.0
          %443 = vmatprep.subr.mxu0 0.0
          %444 = vmatpush2.msra.mxu0 0.0
          %445 = vmatprep.subr.mxu0 0.0
          %446 = vmatpush2.msra.mxu0 0.0
          %447 = vmatprep.subr.mxu0 0.0
          %448 = vmatpush2.msra.mxu0 0.0
          %449 = vmatprep.mubr.f32.mxu0 0.0
          %450 = vmatmul.mubr.f32.gmra.mxu0 %v383
          %v451 = vpop.f32.mrf.mxu0
          %v452 = vadd.f32 0.0, %v451
          %v453 = vpop.f32.mrf.mxu0
          %454 = vdwg.mxu0
          %v455 = vmax.f32 %v452, 0.0
          %vm456 = vcmask 15360
          %v458 = vsel %vm456, %v455, 0
          %vm460 = vcmask 1041408
          %v462 = vsel %vm460, %v380, 0
          %464 = vmatprep.subr.mxu0 0.0
          %465 = vmatpush1.msra.mxu0 0.0
          %466 = vmatprep.subr.mxu0 0.0
          %467 = vmatpush1.msra.mxu0 0.0
          %468 = vmatprep.subr.mxu0 0.0
          %469 = vmatpush1.msra.mxu0 0.0
          %470 = vmatprep.subr.mxu0 0.0
          %471 = vmatpush1.msra.mxu0 0.0
          %472 = vmatprep.subr.mxu0 0.0
          %473 = vmatpush1.msra.mxu0 0.0
          %474 = vmatprep.subr.mxu0 0.0
          %475 = vmatpush1.msra.mxu0 0.0
          %476 = vmatprep.subr.mxu0 0.0
          %477 = vmatpush1.msra.mxu0 0.0
          %478 = vmatprep.subr.mxu0 0.0
          %479 = vmatpush1.msra.mxu0 0.0
          %480 = vmatprep.subr.mxu0 0.0
          %481 = vmatpush1.msra.mxu0 0.0
          %482 = vmatprep.subr.mxu0 0.0
          %483 = vmatpush1.msra.mxu0 0.0
          %484 = vmatprep.subr.mxu0 0.0
          %485 = vmatpush1.msra.mxu0 0.0
          %486 = vmatprep.subr.mxu0 0.0
          %487 = vmatpush1.msra.mxu0 0.0
          %488 = vmatprep.subr.mxu0 0.0
          %489 = vmatpush1.msra.mxu0 0.0
          %490 = vmatprep.subr.mxu0 0.0
          %491 = vmatpush1.msra.mxu0 0.0
          %492 = vmatprep.subr.mxu0 0.0
          %493 = vmatpush1.msra.mxu0 0.0
          %494 = vmatprep.subr.mxu0 0.0
          %495 = vmatpush1.msra.mxu0 %v462
          %496 = vmatprep.subr.mxu0 0.0
          %497 = vmatpush2.msra.mxu0 0.0
          %498 = vmatprep.subr.mxu0 0.0
          %499 = vmatpush2.msra.mxu0 0.0
          %500 = vmatprep.subr.mxu0 0.0
          %501 = vmatpush2.msra.mxu0 0.0
          %502 = vmatprep.subr.mxu0 0.0
          %503 = vmatpush2.msra.mxu0 0.0
          %504 = vmatprep.subr.mxu0 0.0
          %505 = vmatpush2.msra.mxu0 0.0
          %506 = vmatprep.subr.mxu0 0.0
          %507 = vmatpush2.msra.mxu0 0.0
          %508 = vmatprep.subr.mxu0 0.0
          %509 = vmatpush2.msra.mxu0 0.0
          %510 = vmatprep.subr.mxu0 0.0
          %511 = vmatpush2.msra.mxu0 0.0
          %512 = vmatprep.subr.mxu0 0.0
          %513 = vmatpush2.msra.mxu0 0.0
          %514 = vmatprep.subr.mxu0 0.0
          %515 = vmatpush2.msra.mxu0 0.0
          %516 = vmatprep.subr.mxu0 0.0
          %517 = vmatpush2.msra.mxu0 0.0
          %518 = vmatprep.subr.mxu0 0.0
          %519 = vmatpush2.msra.mxu0 0.0
          %520 = vmatprep.subr.mxu0 0.0
          %521 = vmatpush2.msra.mxu0 0.0
          %522 = vmatprep.subr.mxu0 0.0
          %523 = vmatpush2.msra.mxu0 0.0
          %524 = vmatprep.subr.mxu0 0.0
          %525 = vmatpush2.msra.mxu0 0.0
          %526 = vmatprep.subr.mxu0 0.0
          %527 = vmatpush2.msra.mxu0 0.0
          %528 = vmatprep.mubr.f32.mxu0 0.0
          %529 = vmatmul.mubr.f32.gmra.mxu0 %v458
          %v530 = vpop.f32.mrf.mxu0
          %v531 = vadd.f32 0.0, %v530
          %v532 = vpop.f32.mrf.mxu0
          %533 = vdwg.mxu0
          %v535 = vrot.slane %v531, 1
          %v537 = vadd.f32 %v531, %v535
          %v538 = vxor.u32 %v537, 2147483648
          %v539 = vmul.f32 %v538, 1.442695
          %v540 = vpow.pop %v539
          %v541 = vadd.f32 %v540, 1.0
          %v542 = vrcp.pop %v541
          %v543 = vmul.f32 1.0, %v542
          %vm544 = vcmask 253952
          %545 = vst.msk [vmem:[%s203] sm:$0x1] %vm544, %v543
        $region48: #{tpu_custom_call.1} parent=31 // pred_fallthru
          _
        %s546 = sand.u32 %s110, 1
        %s547 = scalar_lea.sflag [#allocation5], %s546
        %s548 = sand.u32 %s110, 1
        %s549 = scalar_lea.vmem [#allocation6], %s548
        // Predicated region
        $region49: #{tpu_custom_call.1} parent=31 // pred_check
          %p550 = pneg %p120
        $region50: #{tpu_custom_call.1} parent=31 // pred_check_branch
          %552 = sbr.rel (%p550) target = $region52
        $region51: #{tpu_custom_call.1} parent=31 // pred_region
          %s554 = ssub.s32 16, 16
          %555 = vsyncadd %s547, %s554
          %s556 = smul.addr %s24, 16
          %s557 = scalar_lea.hbm %s3, %s556
          %s559 = sshll.u32 %s549, 4
          %s560 = int_to_ptr.vmem [resolvable:$true] %s559
          %562 = dma.vmem_to_hbm [thread:$0]  %s560, 16, %s557, %s547
        $region52: #{tpu_custom_call.1} parent=31 // pred_fallthru
          _
      $region32: #{tpu_custom_call.1} parent=5 // pred_fallthru
        _
      %p563 = scmp.le.s32.totalorder 2, %s15
      // Predicated region
      $region53: #{tpu_custom_call.1} parent=5 // pred_check
        %p564 = pneg %p563
      $region54: #{tpu_custom_call.1} parent=5 // pred_check_branch
        %566 = sbr.rel (%p564) target = $region56
      $region55: #{tpu_custom_call.1} parent=5 // pred_region
        %s567 = ssub.s32 %s15, 2
        // Predicated region
        $region57: #{tpu_custom_call.1} parent=55 // pred_check
          %p568 = pneg %p126
        $region58: #{tpu_custom_call.1} parent=55 // pred_check_branch
          %570 = sbr.rel (%p568) target = $region60
        $region59: #{tpu_custom_call.1} parent=55 // pred_region
          %s571 = sand.u32 %s111, 1
          %s572 = scalar_lea.sflag [#allocation5], %s571
          %s573 = sand.u32 %s111, 1
          %s574 = scalar_lea.vmem [#allocation6], %s573
          %575 = dma.done %s572, 16
        $region60: #{tpu_custom_call.1} parent=55 // pred_fallthru
          _
      $region56: #{tpu_custom_call.1} parent=5 // pred_fallthru
        _
    $region6: #{tpu_custom_call.1} parent=1 // loop_footer
      %s19 = sadd.s32 1, %s15
    $region7: #{tpu_custom_call.1} parent=1 // loop_footer_branch
      %14 = sbr.rel target = $region3
    $region8: #{tpu_custom_call.1} parent=1 // loop_exit
      _
    %576 = vsyncpa [#allocation4], 1
    %s577 = scalar_lea.sflag [#allocation4], 1
    %578 = vsyncpa %s577, 1
    %579 = vsyncpa [#allocation5], 1
    %s580 = scalar_lea.sflag [#allocation5], 1
    %581 = vsyncpa %s580, 1

</llo_original>
